<compile_context>
chip_gen: v7x
topology: tpu7x:2x2x1
jax: 0.10.0
libtpu: 0.0.40
codegen_flags: <defaults>
</compile_context>

<pallas_src>
import functools

import jax
import jax.numpy as jnp
from jax.experimental import pallas as pl
from jax.experimental.pallas import tpu as pltpu


def _round_up(x, m):
    return (x + m - 1) // m * m


def _nbytes(a):
    return a.size * a.dtype.itemsize


# ----------------------------------------------------------------------------
# Layer 1: tiled Linear + bias + ReLU.  grid = (M//tm, N//tn, K//tk), K last.
# bf16 operands, fp32 accumulation in a small per-tile scratch (the full-output
# accumulator of the previous version is gone; VMEM use is bounded by the tile).
# ----------------------------------------------------------------------------
def _linear_relu_kernel(x_ref, w_ref, b_ref, o_ref, acc_ref):
    k = pl.program_id(2)

    @pl.when(k == 0)
    def _():
        acc_ref[...] = jnp.zeros_like(acc_ref)

    acc_ref[...] += jnp.dot(x_ref[...], w_ref[...],
                            preferred_element_type=jnp.float32)

    @pl.when(k == pl.num_programs(2) - 1)
    def _():
        y = acc_ref[...] + b_ref[...].astype(jnp.float32)
        o_ref[...] = jnp.maximum(y, 0.0).astype(o_ref.dtype)


def linear_relu(x, w, b, *, tm, tn, tk, out_dtype=jnp.bfloat16):
    """ReLU(x @ w + b).  x:(M,K) bf16, w:(K,N) bf16, b:(1,N) fp32."""
    M, K = x.shape
    K2, N = w.shape
    assert K == K2 and b.shape == (1, N)
    assert M % tm == 0 and N % tn == 0 and K % tk == 0

    cost = pl.CostEstimate(
        flops=2 * M * K * N,
        transcendentals=0,
        bytes_accessed=_nbytes(x) + _nbytes(w) + _nbytes(b)
        + M * N * jnp.dtype(out_dtype).itemsize,
    )
    return pl.pallas_call(
        _linear_relu_kernel,
        out_shape=jax.ShapeDtypeStruct((M, N), out_dtype),
        grid_spec=pltpu.PrefetchScalarGridSpec(
            num_scalar_prefetch=0,
            grid=(M // tm, N // tn, K // tk),
            in_specs=[
                pl.BlockSpec((tm, tk), lambda i, j, k: (i, k)),   # x tile
                pl.BlockSpec((tk, tn), lambda i, j, k: (k, j)),   # w tile
                pl.BlockSpec((1, tn), lambda i, j, k: (0, j)),    # bias slice
            ],
            out_specs=pl.BlockSpec((tm, tn), lambda i, j, k: (i, j)),
            scratch_shapes=[pltpu.VMEM((tm, tn), jnp.float32)],
        ),
        compiler_params=pltpu.CompilerParams(
            dimension_semantics=("parallel", "parallel", "arbitrary")),
        cost_estimate=cost,
    )(x, w, b)


# ----------------------------------------------------------------------------
# Fused layers 2 + 3: h -> ReLU(h@w2+b2) -> (.)@w3+b3, tiled over M only.
# w2/w3/biases stay VMEM-resident across the M grid; intermediates never touch HBM.
# ----------------------------------------------------------------------------
def _mlp_tail_kernel(h_ref, w2_ref, b2_ref, w3_ref, b3_ref, o_ref):
    h2 = jnp.dot(h_ref[...], w2_ref[...], preferred_element_type=jnp.float32)
    h2 = jnp.maximum(h2 + b2_ref[...].astype(jnp.float32), 0.0)
    out = jnp.dot(h2.astype(w3_ref.dtype), w3_ref[...],
                  preferred_element_type=jnp.float32)
    o_ref[...] = (out + b3_ref[...].astype(jnp.float32)).astype(o_ref.dtype)


def mlp_tail(h, w2, b2, w3, b3, *, tm):
    M, H = h.shape
    H2, H3 = w2.shape
    H4, NO = w3.shape
    assert H == H2 == H3 == H4
    assert b2.shape == (1, H) and b3.shape == (1, NO)
    assert M % tm == 0

    cost = pl.CostEstimate(
        flops=2 * M * H * H + 2 * M * H * NO,
        transcendentals=0,
        bytes_accessed=_nbytes(h) + _nbytes(w2) + _nbytes(w3)
        + _nbytes(b2) + _nbytes(b3) + M * NO * 4,
    )
    return pl.pallas_call(
        _mlp_tail_kernel,
        out_shape=jax.ShapeDtypeStruct((M, NO), jnp.float32),
        grid_spec=pltpu.PrefetchScalarGridSpec(
            num_scalar_prefetch=0,
            grid=(M // tm,),
            in_specs=[
                pl.BlockSpec((tm, H), lambda i: (i, 0)),   # activations tile
                pl.BlockSpec((H, H), lambda i: (0, 0)),    # w2 (resident)
                pl.BlockSpec((1, H), lambda i: (0, 0)),    # b2 (resident)
                pl.BlockSpec((H, NO), lambda i: (0, 0)),   # w3 (resident)
                pl.BlockSpec((1, NO), lambda i: (0, 0)),   # b3 (resident)
            ],
            out_specs=pl.BlockSpec((tm, NO), lambda i: (i, 0)),
        ),
        compiler_params=pltpu.CompilerParams(
            dimension_semantics=("parallel",)),
        cost_estimate=cost,
    )(h, w2, b2, w3, b3)


# ----------------------------------------------------------------------------
# FocalLoss: stable BCE-with-logits -> focal reweighting (square, not pow) -> mean.
# ----------------------------------------------------------------------------
def _focal_loss_kernel(logits_ref, target_ref, out_ref, *, gamma):
    x = logits_ref[...].astype(jnp.float32)
    t = target_ref[...].astype(jnp.float32)
    ce = jnp.maximum(x, 0.0) - x * t + jnp.log1p(jnp.exp(-jnp.abs(x)))
    pt = jnp.exp(-ce)
    one_m_pt = 1.0 - pt
    if gamma == 2:
        w = one_m_pt * one_m_pt          # VPU mul; avoids exp(gamma*log(.)) on EUP
    else:
        w = one_m_pt ** gamma
    fl = w * ce
    out_ref[0, 0] = jnp.sum(fl) / jnp.float32(fl.size)


def focal_loss(logits, target, gamma=2.0):
    kernel = functools.partial(_focal_loss_kernel, gamma=gamma)
    out = pl.pallas_call(
        kernel,
        out_shape=jax.ShapeDtypeStruct((1, 1), jnp.float32),
        in_specs=[
            pl.BlockSpec(memory_space=pltpu.VMEM),
            pl.BlockSpec(memory_space=pltpu.VMEM),
        ],
        out_specs=pl.BlockSpec(memory_space=pltpu.SMEM),
    )(logits, target)
    return out[0, 0]
    # TODO(synk): self.alpha gating (alpha_t = alpha[target]) is None in the
    # module's default construction, so it is not implemented here.


# ----------------------------------------------------------------------------
# Parameter init (PyTorch-Linear-style uniform bounds); weights stored bf16,
# biases fp32; w3/b3 padded to a lane-dense multiple of 128 output columns.
# ----------------------------------------------------------------------------
def init_classifier_params(key, num_in, num_hidden, num_out,
                           weight_dtype=jnp.bfloat16):
    assert num_hidden % 128 == 0, "hidden width must be lane-aligned (x128)"
    out_pad = _round_up(num_out, 128)

    def lin(k, fan_in, fan_out, pad_to=None):
        kw, kb = jax.random.split(k)
        bound = float(fan_in) ** -0.5
        w = jax.random.uniform(kw, (fan_in, fan_out), jnp.float32, -bound, bound)
        b = jax.random.uniform(kb, (1, fan_out), jnp.float32, -bound, bound)
        if pad_to is not None and pad_to != fan_out:
            w = jnp.zeros((fan_in, pad_to), jnp.float32).at[:, :fan_out].set(w)
            b = jnp.zeros((1, pad_to), jnp.float32).at[:, :fan_out].set(b)
        return w.astype(weight_dtype), b

    k1, k2, k3 = jax.random.split(key, 3)
    w1, b1 = lin(k1, num_in, num_hidden)
    w2, b2 = lin(k2, num_hidden, num_hidden)
    w3, b3 = lin(k3, num_hidden, num_out, pad_to=out_pad)
    return {"w1": w1, "b1": b1, "w2": w2, "b2": b2, "w3": w3, "b3": b3,
            "num_out": num_out}


# ----------------------------------------------------------------------------
# Classifier.forward
# ----------------------------------------------------------------------------
def classifier_forward(params, batch, training=False):
    num_out = params["num_out"]
    feat = batch["feat"]
    B = feat.shape[0]
    feat = feat.reshape(B, -1)                       # feat.view(B, -1)
    K = feat.shape[1]
    H = params["w1"].shape[1]

    # Tile sizes / padding: M padded to >=16 (bf16 sublane packing), K padded to
    # the K-tile, output columns already lane-dense (padded at init).
    if B <= 128:
        m_pad = _round_up(max(B, 1), 16)
    else:
        m_pad = _round_up(B, 128)
    tm = min(128, m_pad)

    tk = 256 if K >= 256 else _round_up(K, 128)
    k_pad = _round_up(K, tk)
    tn = 256 if H % 256 == 0 else 128

    x = feat.astype(jnp.bfloat16)
    if m_pad != B or k_pad != K:
        x = jnp.zeros((m_pad, k_pad), jnp.bfloat16).at[:B, :K].set(x)
    w1 = params["w1"]
    if k_pad != K:
        w1 = jnp.zeros((k_pad, H), w1.dtype).at[:K, :].set(w1)

    h1 = linear_relu(x, w1, params["b1"], tm=tm, tn=tn, tk=tk)
    logits_padded = mlp_tail(h1, params["w2"], params["b2"],
                             params["w3"], params["b3"], tm=tm)
    out = logits_padded[:B, :num_out]                # drop M / N padding

    if not training:
        return out
    label = jnp.stack(batch["labels"])               # torch.stack(batch['labels'])
    assert out.shape == label.shape
    return focal_loss(out.astype(jnp.float32), label.astype(jnp.float32))


if __name__ == "__main__":
    # Small shapes consistent with the module structure (scaled down from
    # num_in=128*256, hidden=2048, out=360).
    B = 2
    FEAT_H, FEAT_W = 16, 32        # feat (B, 16, 32) -> flattened num_in = 512
    NUM_IN = FEAT_H * FEAT_W       # 512
    NUM_HIDDEN = 256
    NUM_OUT = 360

    key = jax.random.PRNGKey(0)
    k_params, k_feat, k_lab = jax.random.split(key, 3)

    params = init_classifier_params(k_params, NUM_IN, NUM_HIDDEN, NUM_OUT)

    feat = jax.random.normal(k_feat, (B, FEAT_H, FEAT_W), dtype=jnp.float32)
    labels = [
        (jax.random.uniform(k, (NUM_OUT,)) > 0.9).astype(jnp.float32)
        for k in jax.random.split(k_lab, B)
    ]
    batch = {"feat": feat, "labels": labels}

    # Inference path (module in eval mode): returns the adapter logits.
    out = classifier_forward(params, batch, training=False)
    out = jax.block_until_ready(out)
    assert out.shape == (B, NUM_OUT)

    # Training path: returns the scalar focal loss.
    loss = classifier_forward(params, batch, training=True)
    loss = jax.block_until_ready(loss)
    assert loss.shape == ()

    print("KERNEL_OK")
</pallas_src>

<mosaic_0001>
module attributes {stable_mosaic.version = 11 : i64} {
  func.func @_linear_relu_kernel(%arg0: i32, %arg1: i32, %arg2: i32, %arg3: memref<16x256xbf16, #tpu.memory_space<vmem>>, %arg4: memref<256x256xbf16, #tpu.memory_space<vmem>>, %arg5: memref<1x256xf32, #tpu.memory_space<vmem>>, %arg6: memref<16x256xbf16, #tpu.memory_space<vmem>>, %arg7: memref<16x256xf32, #tpu.memory_space<vmem>>) attributes {dimension_semantics = [#tpu.dimension_semantics<parallel>, #tpu.dimension_semantics<parallel>, #tpu.dimension_semantics<arbitrary>], iteration_bounds = array<i64: 1, 1, 2>, scalar_prefetch = 0 : i64, scratch_operands = 1 : i64, tpu.core_type = #tpu.core_type<tc>, window_params = [{transform_indices = @transform_0, window_bounds = array<i64: 16, 256>}, {transform_indices = @transform_1, window_bounds = array<i64: 256, 256>}, {transform_indices = @transform_2, window_bounds = array<i64: 1, 256>}, {transform_indices = @transform_3, window_bounds = array<i64: 16, 256>}]} {
    %c0_i32 = arith.constant 0 : i32
    %0 = arith.cmpi eq, %arg2, %c0_i32 : i32
    %1 = arith.extui %0 : i1 to i32
    %c0_i32_0 = arith.constant 0 : i32
    %2 = arith.cmpi ne, %1, %c0_i32_0 : i32
    scf.if %2 {
      %cst_9 = arith.constant 0.000000e+00 : f32
      %12 = vector.broadcast %cst_9 : f32 to vector<16x256xf32>
      %c0_10 = arith.constant 0 : index
      %c0_11 = arith.constant 0 : index
      %13 = vector.load %arg7[%c0_10, %c0_11] : memref<16x256xf32, #tpu.memory_space<vmem>>, vector<16x256xf32>
      tpu.vector_store %arg7[%c0_10, %c0_11], %12 {strides = array<i32>} : memref<16x256xf32, #tpu.memory_space<vmem>>, vector<16x256xf32>,
    } else {
    }
    %c0 = arith.constant 0 : index
    %c0_1 = arith.constant 0 : index
    %3 = vector.load %arg7[%c0, %c0_1] : memref<16x256xf32, #tpu.memory_space<vmem>>, vector<16x256xf32>
    %c0_2 = arith.constant 0 : index
    %c0_3 = arith.constant 0 : index
    %4 = vector.load %arg3[%c0_2, %c0_3] : memref<16x256xbf16, #tpu.memory_space<vmem>>, vector<16x256xbf16>
    %c0_4 = arith.constant 0 : index
    %c0_5 = arith.constant 0 : index
    %5 = vector.load %arg4[%c0_4, %c0_5] : memref<256x256xbf16, #tpu.memory_space<vmem>>, vector<256x256xbf16>
    %cst = arith.constant dense<0.000000e+00> : vector<16x256xf32>
    %6 = tpu.matmul %4, %5, %cst {dimension_numbers = #tpu.dot_dimension_numbers<[1], [0], [0], [1], [0, 0, 1, 1], [], []>} : vector<16x256xbf16>, vector<256x256xbf16>, vector<16x256xf32> -> vector<16x256xf32>
    %7 = arith.addf %3, %6 : vector<16x256xf32>
    %c0_6 = arith.constant 0 : index
    %c0_7 = arith.constant 0 : index
    %8 = vector.load %arg7[%c0_6, %c0_7] : memref<16x256xf32, #tpu.memory_space<vmem>>, vector<16x256xf32>
    tpu.vector_store %arg7[%c0_6, %c0_7], %7 {strides = array<i32>} : memref<16x256xf32, #tpu.memory_space<vmem>>, vector<16x256xf32>,
    %c1_i32 = arith.constant 1 : i32
    %9 = arith.cmpi eq, %arg2, %c1_i32 : i32
    %10 = arith.extui %9 : i1 to i32
    %c0_i32_8 = arith.constant 0 : i32
    %11 = arith.cmpi ne, %10, %c0_i32_8 : i32
    scf.if %11 {
      %c0_9 = arith.constant 0 : index
      %c0_10 = arith.constant 0 : index
      %12 = vector.load %arg7[%c0_9, %c0_10] : memref<16x256xf32, #tpu.memory_space<vmem>>, vector<16x256xf32>
      %c0_11 = arith.constant 0 : index
      %c0_12 = arith.constant 0 : index
      %13 = vector.load %arg5[%c0_11, %c0_12] : memref<1x256xf32, #tpu.memory_space<vmem>>, vector<1x256xf32>
      %14 = vector.broadcast %13 : vector<1x256xf32> to vector<16x256xf32>
      %15 = arith.addf %12, %14 : vector<16x256xf32>
      %cst_13 = arith.constant 0.000000e+00 : f32
      %16 = vector.broadcast %cst_13 : f32 to vector<16x256xf32>
      %17 = arith.maximumf %15, %16 : vector<16x256xf32>
      %18 = arith.truncf %17 : vector<16x256xf32> to vector<16x256xbf16>
      %c0_14 = arith.constant 0 : index
      %c0_15 = arith.constant 0 : index
      %19 = vector.load %arg6[%c0_14, %c0_15] : memref<16x256xbf16, #tpu.memory_space<vmem>>, vector<16x256xbf16>
      tpu.vector_store %arg6[%c0_14, %c0_15], %18 {strides = array<i32>} : memref<16x256xbf16, #tpu.memory_space<vmem>>, vector<16x256xbf16>,
    } else {
    }
    return
  }
  func.func @transform_0(%arg0: i32, %arg1: i32, %arg2: i32) -> (i32, i32) {
    %c0_i32 = arith.constant 0 : i32
    return %arg0, %arg2 : i32, i32
  }
  func.func @transform_1(%arg0: i32, %arg1: i32, %arg2: i32) -> (i32, i32) {
    %c0_i32 = arith.constant 0 : i32
    return %arg2, %arg1 : i32, i32
  }
  func.func @transform_2(%arg0: i32, %arg1: i32, %arg2: i32) -> (i32, i32) {
    %c0_i32 = arith.constant 0 : i32
    %c0_i32_0 = arith.constant 0 : i32
    return %c0_i32, %arg1 : i32, i32
  }
  func.func @transform_3(%arg0: i32, %arg1: i32, %arg2: i32) -> (i32, i32) {
    %c0_i32 = arith.constant 0 : i32
    return %arg0, %arg1 : i32, i32
  }
}

</mosaic_0001>

<llo_original>
// kernel: tpu_custom_call.1
$region0: #{tpu_custom_call.1}
  #allocation0 [shape = 'u32[]', space=smem, size = 0x4, offset = 0x4, fixed_abs, tag = 'smem constant byte address 0x4 - core index']
  #allocation1 [shape = 'u32[144,128]{1,0:T(1,128)}', space=vmem, size = 0x12000, scoped, tag = 'internal scratch']
  #allocation2 [shape = 'f32[16,256]{1,0:T(8,128)}', space=vmem, size = 0x4000, scoped, tag = 'scratch operand']
  %s0 = inlined_call_operand.hbm [shape: bf16[16,512], index: 0, kind: input, shape index: {}]
  %s1 = inlined_call_operand.hbm [shape: bf16[512,256], index: 1, kind: input, shape index: {}]
  %s2 = inlined_call_operand.vmem [shape: f32[1,256], index: 2, kind: input, shape index: {}]
  %s3 = inlined_call_operand.hbm [shape: bf16[16,256], index: 3, kind: output, shape index: {}]
  %s4 = sld [smem:[#allocation0]]
  $region61: #{tpu_custom_call.1} parent=0
    _
  %s6 = ssub.s32 1, %s4
  %s7 = scalar_select 0, %s6, %s4
  $region1: #{tpu_custom_call.1} parent=0
    #allocation3 [shape = 'u8[16384]{0}', space=vmem, size = 0x4000, scoped, tag = 'input window, operand 0']
    #allocation4 [shape = 's32[2]{0}', space=sflag, size = 0x8, scoped, tag = 'scoped memory for tpu_custom_call.1']
    #allocation5 [shape = 's32[2]{0}', space=sflag, size = 0x8, scoped, tag = 'scoped memory for tpu_custom_call.1']
    #allocation6 [shape = 'u8[262144]{0}', space=vmem, size = 0x40000, scoped, tag = 'input window, operand 1']
    #allocation7 [shape = 's32[2]{0}', space=sflag, size = 0x8, scoped, tag = 'scoped memory for tpu_custom_call.1']
    #allocation8 [shape = 'u8[8192]{0}', space=vmem, size = 0x2000, scoped, tag = 'output window, operand 0, single buffered']
    %8 = vsyncpa [#allocation4], 0
    %s9 = scalar_lea.sflag [#allocation4], 1
    %10 = vsyncpa %s9, 0
    %11 = vsyncpa [#allocation7], 0
    %s12 = scalar_lea.sflag [#allocation7], 1
    %13 = vsyncpa %s12, 0
    %14 = vsyncpa [#allocation5], 0
    loop: start=0, step=1, limit=4
    $region2: #{tpu_custom_call.1} parent=1 // loop_pre_header
      _
    $region3: #{tpu_custom_call.1} parent=1 // loop_header
      %s16 = sphi 0, %s20
      %p17 = scmp.ge.s32.totalorder %s16, 4
      %s23 = sphi 0, %s42
      %s24 = sphi 0, %s38
      %s25 = sphi 0, %s34
      %s26 = sphi 0, %s23
      %s27 = sphi 0, %s24
      %s28 = sphi 0, %s25
      %s29 = sphi 0, %s26
      %s30 = sphi 0, %s27
      %s31 = sphi 0, %s28
      %s47 = sphi 0, %s49
      %s50 = sphi 0, %s47
      %s51 = sphi 0, %s50
      %s67 = sphi 0, %s51
      %s75 = sphi 0, %s77
      %s78 = sphi 0, %s75
      %s79 = sphi 0, %s78
      %s95 = sphi 0, %s79
      %s101 = sphi 0, %s103
      %s104 = sphi 0, %s101
      %s105 = sphi 0, %s104
      %s121 = sphi 0, %s105
      %s129 = sphi 0, %s131
      %s132 = sphi 0, %s129
      %s133 = sphi 0, %s132
      %s149 = sphi 0, %s133
    $region4: #{tpu_custom_call.1} parent=1 // loop_header_branch
      %19 = sbr.rel (%p17) target = $region8
    $region5: #{tpu_custom_call.1} parent=1 // loop_body
      %s21 = ssub.s32 %s16, 1
      %s22 = ssub.s32 %s16, 2
      %s32 = sadd.s32 1, %s25
      %p33 = scmp.ge.s32.totalorder %s32, 2
      %s34 = scalar_select %p33, 0, %s32
      %s35 = sadd.s32 1, %s24
      %s36 = scalar_select %p33, %s35, %s24
      %p37 = scmp.ge.s32.totalorder %s36, 1
      %s38 = scalar_select %p37, 0, %s36
      %s39 = sadd.s32 1, %s23
      %s40 = scalar_select %p37, %s39, %s23
      %p41 = scmp.ge.s32.totalorder %s40, 1
      %s42 = scalar_select %p41, 0, %s40
      %s43 = ssub.s32 %s23, %s42
      %s44 = ssub.s32 %s25, %s34
      %s45 = sor.u32 %s43, %s44
      %p46 = scmp.eq.s32.totalorder %s45, 0
      %s48 = sadd.s32 %s47, 1
      %s49 = scalar_select %p46, %s47, %s48
      %p52 = pneg %p46
      %p53 = scmp.eq.s32.totalorder %s16, 1
      %p54 = por %p52, %p53
      %p55 = scmp.ne.s32.totalorder %s47, %s50
      %p56 = scmp.eq.s32.totalorder %s16, 0
      %p57 = por %p55, %p56
      %p58 = scmp.ne.s32.totalorder %s47, %s50
      %p59 = scmp.eq.s32.totalorder %s21, 1
      %p60 = por %p58, %p59
      %p61 = scmp.ne.s32.totalorder %s50, %s51
      %p62 = scmp.eq.s32.totalorder %s21, 0
      %p63 = por %p61, %p62
      %p64 = scmp.ne.s32.totalorder %s50, %s51
      %p65 = scmp.eq.s32.totalorder %s22, 1
      %p66 = por %p64, %p65
      %p68 = scmp.ne.s32.totalorder %s51, %s67
      %p69 = scmp.eq.s32.totalorder %s22, 0
      %p70 = por %p68, %p69
      %s71 = ssub.s32 %s25, %s34
      %s72 = ssub.s32 %s24, %s38
      %s73 = sor.u32 %s71, %s72
      %p74 = scmp.eq.s32.totalorder %s73, 0
      %s76 = sadd.s32 %s75, 1
      %s77 = scalar_select %p74, %s75, %s76
      %p80 = pneg %p74
      %p81 = scmp.eq.s32.totalorder %s16, 1
      %p82 = por %p80, %p81
      %p83 = scmp.ne.s32.totalorder %s75, %s78
      %p84 = scmp.eq.s32.totalorder %s16, 0
      %p85 = por %p83, %p84
      %p86 = scmp.ne.s32.totalorder %s75, %s78
      %p87 = scmp.eq.s32.totalorder %s21, 1
      %p88 = por %p86, %p87
      %p89 = scmp.ne.s32.totalorder %s78, %s79
      %p90 = scmp.eq.s32.totalorder %s21, 0
      %p91 = por %p89, %p90
      %p92 = scmp.ne.s32.totalorder %s78, %s79
      %p93 = scmp.eq.s32.totalorder %s22, 1
      %p94 = por %p92, %p93
      %p96 = scmp.ne.s32.totalorder %s79, %s95
      %p97 = scmp.eq.s32.totalorder %s22, 0
      %p98 = por %p96, %p97
      %s99 = ssub.s32 %s24, %s38
      %p100 = scmp.eq.s32.totalorder %s99, 0
      %s102 = sadd.s32 %s101, 1
      %s103 = scalar_select %p100, %s101, %s102
      %p106 = pneg %p100
      %p107 = scmp.eq.s32.totalorder %s16, 1
      %p108 = por %p106, %p107
      %p109 = scmp.ne.s32.totalorder %s101, %s104
      %p110 = scmp.eq.s32.totalorder %s16, 0
      %p111 = por %p109, %p110
      %p112 = scmp.ne.s32.totalorder %s101, %s104
      %p113 = scmp.eq.s32.totalorder %s21, 1
      %p114 = por %p112, %p113
      %p115 = scmp.ne.s32.totalorder %s104, %s105
      %p116 = scmp.eq.s32.totalorder %s21, 0
      %p117 = por %p115, %p116
      %p118 = scmp.ne.s32.totalorder %s104, %s105
      %p119 = scmp.eq.s32.totalorder %s22, 1
      %p120 = por %p118, %p119
      %p122 = scmp.ne.s32.totalorder %s105, %s121
      %p123 = scmp.eq.s32.totalorder %s22, 0
      %p124 = por %p122, %p123
      %s125 = ssub.s32 %s23, %s42
      %s126 = ssub.s32 %s24, %s38
      %s127 = sor.u32 %s125, %s126
      %p128 = scmp.eq.s32.totalorder %s127, 0
      %s130 = sadd.s32 %s129, 1
      %s131 = scalar_select %p128, %s129, %s130
      %p134 = pneg %p128
      %p135 = scmp.eq.s32.totalorder %s16, 1
      %p136 = por %p134, %p135
      %p137 = scmp.ne.s32.totalorder %s129, %s132
      %p138 = scmp.eq.s32.totalorder %s16, 0
      %p139 = por %p137, %p138
      %p140 = scmp.ne.s32.totalorder %s129, %s132
      %p141 = scmp.eq.s32.totalorder %s21, 1
      %p142 = por %p140, %p141
      %p143 = scmp.ne.s32.totalorder %s132, %s133
      %p144 = scmp.eq.s32.totalorder %s21, 0
      %p145 = por %p143, %p144
      %p146 = scmp.ne.s32.totalorder %s132, %s133
      %p147 = scmp.eq.s32.totalorder %s22, 1
      %p148 = por %p146, %p147
      %p150 = scmp.ne.s32.totalorder %s133, %s149
      %p151 = scmp.eq.s32.totalorder %s22, 0
      %p152 = por %p150, %p151
      %p153 = scmp.le.s32.totalorder 1, %s16
      %p154 = scmp.lt.s32.totalorder %s16, 3
      %p155 = pnand %p153, %p154
      %p156 = pneg %p155
      // Predicated region
      $region9: #{tpu_custom_call.1} parent=5 // pred_check
        _
      $region10: #{tpu_custom_call.1} parent=5 // pred_check_branch
        %158 = sbr.rel (%p155) target = $region12
      $region11: #{tpu_custom_call.1} parent=5 // pred_region
        %s159 = ssub.s32 %s16, 1
        // Predicated region
        $region13: #{tpu_custom_call.1} parent=11 // pred_check
          %p160 = pneg %p117
        $region14: #{tpu_custom_call.1} parent=11 // pred_check_branch
          %162 = sbr.rel (%p160) target = $region16
        $region15: #{tpu_custom_call.1} parent=11 // pred_region
          %s163 = smul.u32 2, %s27
          %p164 = scmp.lt.s32.totalorder %s163, 1
          %s165 = scalar_select %p164, %s163, 1
          %s166 = scalar_lea.vmem %s2, %s165
          %s167 = smul.u32 2, %s27
        $region16: #{tpu_custom_call.1} parent=11 // pred_fallthru
          _
      $region12: #{tpu_custom_call.1} parent=5 // pred_fallthru
        _
      %p168 = scmp.lt.s32.totalorder %s16, 2
      // Predicated region
      $region17: #{tpu_custom_call.1} parent=5 // pred_check
        %p169 = pneg %p168
      $region18: #{tpu_custom_call.1} parent=5 // pred_check_branch
        %171 = sbr.rel (%p169) target = $region20
      $region19: #{tpu_custom_call.1} parent=5 // pred_region
        // Predicated region
        $region21: #{tpu_custom_call.1} parent=19 // pred_check
          %p172 = pneg %p57
        $region22: #{tpu_custom_call.1} parent=19 // pred_check_branch
          %174 = sbr.rel (%p172) target = $region24
        $region23: #{tpu_custom_call.1} parent=19 // pred_region
          %s175 = sand.u32 %s47, 1
          %s176 = scalar_lea.sflag [#allocation4], %s175
          %s177 = sand.u32 %s47, 1
          %s178 = smul.addr %s177, 16
          %s179 = scalar_lea.vmem [#allocation3], %s178
          %s180 = smul.u32 2, %s23
          %s181 = smul.u32 2, %s25
          %s183 = ssub.s32 256, 256
          %184 = vsyncadd %s176, %s183
          %s185 = smul.addr %s180, 4
          %s186 = sadd.s32 %s181, %s185
          %s187 = smul.addr %s186, 64
          %s188 = scalar_lea.hbm %s0, %s187
          %s189 = sshll.u32 %s179, 4
          %s190 = int_to_ptr.vmem [resolvable:$true] %s189
          %195 = dma.hbm_to_vmem [thread:$0]  %s188, 256, %s190, %s176, 256, 128, 8
        $region24: #{tpu_custom_call.1} parent=19 // pred_fallthru
          _
        // Predicated region
        $region25: #{tpu_custom_call.1} parent=19 // pred_check
          %p196 = pneg %p85
        $region26: #{tpu_custom_call.1} parent=19 // pred_check_branch
          %198 = sbr.rel (%p196) target = $region28
        $region27: #{tpu_custom_call.1} parent=19 // pred_region
          %s199 = sand.u32 %s75, 1
          %s200 = scalar_lea.sflag [#allocation7], %s199
          %s201 = sand.u32 %s75, 1
          %s202 = smul.addr %s201, 256
          %s203 = scalar_lea.vmem [#allocation6], %s202
          %s204 = smul.u32 32, %s25
          %s205 = smul.u32 2, %s24
          %s207 = ssub.s32 4096, 4096
          %208 = vsyncadd %s200, %s207
          %s209 = smul.addr %s204, 2
          %s210 = sadd.s32 %s205, %s209
          %s211 = smul.addr %s210, 64
          %s212 = scalar_lea.hbm %s1, %s211
          %s213 = sshll.u32 %s203, 4
          %s214 = int_to_ptr.vmem [resolvable:$true] %s213
          %219 = dma.hbm_to_vmem [thread:$0]  %s212, 4096, %s214, %s200, 128, 128, 8
        $region28: #{tpu_custom_call.1} parent=19 // pred_fallthru
          _
      $region20: #{tpu_custom_call.1} parent=5 // pred_fallthru
        _
      %p220 = scmp.le.s32.totalorder 1, %s16
      %p221 = scmp.lt.s32.totalorder %s16, 3
      %p222 = pnand %p220, %p221
      %p223 = pneg %p222
      // Predicated region
      $region29: #{tpu_custom_call.1} parent=5 // pred_check
        _
      $region30: #{tpu_custom_call.1} parent=5 // pred_check_branch
        %225 = sbr.rel (%p222) target = $region32
      $region31: #{tpu_custom_call.1} parent=5 // pred_region
        %s226 = ssub.s32 %s16, 1
        %s227 = sand.u32 %s50, 1
        %s228 = scalar_lea.sflag [#allocation4], %s227
        %s229 = sand.u32 %s50, 1
        %s230 = smul.addr %s229, 16
        %s231 = scalar_lea.vmem [#allocation3], %s230
        // Predicated region
        $region33: #{tpu_custom_call.1} parent=31 // pred_check
          %p232 = pneg %p63
        $region34: #{tpu_custom_call.1} parent=31 // pred_check_branch
          %234 = sbr.rel (%p232) target = $region36
        $region35: #{tpu_custom_call.1} parent=31 // pred_region
          %235 = dma.done %s228, 256
        $region36: #{tpu_custom_call.1} parent=31 // pred_fallthru
          _
        %s236 = sand.u32 %s78, 1
        %s237 = scalar_lea.sflag [#allocation7], %s236
        %s238 = sand.u32 %s78, 1
        %s239 = smul.addr %s238, 256
        %s240 = scalar_lea.vmem [#allocation6], %s239
        // Predicated region
        $region37: #{tpu_custom_call.1} parent=31 // pred_check
          %p241 = pneg %p91
        $region38: #{tpu_custom_call.1} parent=31 // pred_check_branch
          %243 = sbr.rel (%p241) target = $region40
        $region39: #{tpu_custom_call.1} parent=31 // pred_region
          %244 = dma.done %s237, 4096
        $region40: #{tpu_custom_call.1} parent=31 // pred_fallthru
          _
        %s245 = sand.u32 %s50, 1
        %s246 = scalar_lea.sflag [#allocation4], %s245
        %s247 = sand.u32 %s50, 1
        %s248 = smul.addr %s247, 16
        %s249 = scalar_lea.vmem [#allocation3], %s248
        %p250 = pneg %p63
        %p251 = pneg %p60
        %s252 = sand.u32 %s78, 1
        %s253 = scalar_lea.sflag [#allocation7], %s252
        %s254 = sand.u32 %s78, 1
        %s255 = smul.addr %s254, 256
        %s256 = scalar_lea.vmem [#allocation6], %s255
        %p257 = pneg %p91
        %p258 = pneg %p88
        %s259 = smul.u32 2, %s27
        %p260 = scmp.lt.s32.totalorder %s259, 1
        %s261 = scalar_select %p260, %s259, 1
        %s262 = scalar_lea.vmem %s2, %s261
        %p263 = pneg %p117
        %p264 = pneg %p114
        %p265 = pneg %p145
        %p266 = pneg %p142
        %s267 = smul.u32 2, %s26
        %s268 = smul.u32 2, %s28
        %s269 = smul.u32 32, %s28
        %s270 = smul.u32 2, %s27
        %s271 = smul.u32 2, %s27
        %p272 = scmp.lt.s32.totalorder %s271, 1
        %s273 = scalar_select %p272, %s271, 1
        %s274 = scalar_lea.vmem %s2, %s273
        %s275 = smul.u32 2, %s27
        %s276 = smul.u32 2, %s26
        %s277 = smul.u32 2, %s27
        %p278 = scmp.eq.s32.totalorder %s28, 0
        // Predicated region
        $region41: #{tpu_custom_call.1} parent=31 // pred_check
          %p279 = pneg %p278
        $region42: #{tpu_custom_call.1} parent=31 // pred_check_branch
          %281 = sbr.rel (%p279) target = $region44
        $region43: #{tpu_custom_call.1} parent=31 // pred_region
          %282 = vst [vmem:[#allocation2] sm:$0xff] 0.0
          %283 = vst [vmem:[#allocation2 + $0x8] sm:$0xff] 0.0
          %284 = vst [vmem:[#allocation2 + $0x10] sm:$0xff] 0.0
          %285 = vst [vmem:[#allocation2 + $0x18] sm:$0xff] 0.0
        $region44: #{tpu_custom_call.1} parent=31 // pred_fallthru
          _
        %v286 = vld [vmem:[#allocation2] sm:$0xff]
        %v287 = vld [vmem:[#allocation2 + $0x8] sm:$0xff]
        %v288 = vld [vmem:[#allocation2 + $0x10] sm:$0xff]
        %v289 = vld [vmem:[#allocation2 + $0x18] sm:$0xff]
        %v290 = vld [vmem:[%s231] sm:$0xff]
        %v291 = vld [vmem:[%s231 + $0x8] sm:$0xff]
        %v292 = vld [vmem:[%s240] sm:$0xff]
        %v293 = vld [vmem:[%s240 + $0x8] sm:$0xff]
        %v294 = vld [vmem:[%s240 + $0x10] sm:$0xff]
        %v295 = vld [vmem:[%s240 + $0x18] sm:$0xff]
        %v296 = vld [vmem:[%s240 + $0x20] sm:$0xff]
        %v297 = vld [vmem:[%s240 + $0x28] sm:$0xff]
        %v298 = vld [vmem:[%s240 + $0x30] sm:$0xff]
        %v299 = vld [vmem:[%s240 + $0x38] sm:$0xff]
        %v300 = vld [vmem:[%s240 + $0x40] sm:$0xff]
        %v301 = vld [vmem:[%s240 + $0x48] sm:$0xff]
        %v302 = vld [vmem:[%s240 + $0x50] sm:$0xff]
        %v303 = vld [vmem:[%s240 + $0x58] sm:$0xff]
        %v304 = vld [vmem:[%s240 + $0x60] sm:$0xff]
        %v305 = vld [vmem:[%s240 + $0x68] sm:$0xff]
        %v306 = vld [vmem:[%s240 + $0x70] sm:$0xff]
        %v307 = vld [vmem:[%s240 + $0x78] sm:$0xff]
        %v308 = vld [vmem:[%s240 + $0x80] sm:$0xff]
        %v309 = vld [vmem:[%s240 + $0x88] sm:$0xff]
        %v310 = vld [vmem:[%s240 + $0x90] sm:$0xff]
        %v311 = vld [vmem:[%s240 + $0x98] sm:$0xff]
        %v312 = vld [vmem:[%s240 + $0xa0] sm:$0xff]
        %v313 = vld [vmem:[%s240 + $0xa8] sm:$0xff]
        %v314 = vld [vmem:[%s240 + $0xb0] sm:$0xff]
        %v315 = vld [vmem:[%s240 + $0xb8] sm:$0xff]
        %v316 = vld [vmem:[%s240 + $0xc0] sm:$0xff]
        %v317 = vld [vmem:[%s240 + $0xc8] sm:$0xff]
        %v318 = vld [vmem:[%s240 + $0xd0] sm:$0xff]
        %v319 = vld [vmem:[%s240 + $0xd8] sm:$0xff]
        %v320 = vld [vmem:[%s240 + $0xe0] sm:$0xff]
        %v321 = vld [vmem:[%s240 + $0xe8] sm:$0xff]
        %v322 = vld [vmem:[%s240 + $0xf0] sm:$0xff]
        %v323 = vld [vmem:[%s240 + $0xf8] sm:$0xff]
        %v326 = vunpack.c.l.b16 %v290
        %v327 = vunpack.c.h.b16 %v290
        %v328 = vunpack.c.l.b16 %v291
        %v329 = vunpack.c.h.b16 %v291
        %v330 = vpack.c.b16 %v328, %v326
        %v331 = vpack.c.b16 %v329, %v327
        %v366 = vunpack.c.l.b16 %v292
        %v367 = vunpack.c.h.b16 %v292
        %v368 = vunpack.c.l.b16 %v293
        %v369 = vunpack.c.h.b16 %v293
        %v370 = vunpack.c.l.b16 %v294
        %v371 = vunpack.c.h.b16 %v294
        %v372 = vunpack.c.l.b16 %v295
        %v373 = vunpack.c.h.b16 %v295
        %v374 = vunpack.c.l.b16 %v296
        %v375 = vunpack.c.h.b16 %v296
        %v376 = vunpack.c.l.b16 %v297
        %v377 = vunpack.c.h.b16 %v297
        %v378 = vunpack.c.l.b16 %v298
        %v379 = vunpack.c.h.b16 %v298
        %v380 = vunpack.c.l.b16 %v299
        %v381 = vunpack.c.h.b16 %v299
        %v382 = vunpack.c.l.b16 %v300
        %v383 = vunpack.c.h.b16 %v300
        %v384 = vunpack.c.l.b16 %v301
        %v385 = vunpack.c.h.b16 %v301
        %v386 = vunpack.c.l.b16 %v302
        %v387 = vunpack.c.h.b16 %v302
        %v388 = vunpack.c.l.b16 %v303
        %v389 = vunpack.c.h.b16 %v303
        %v390 = vunpack.c.l.b16 %v304
        %v391 = vunpack.c.h.b16 %v304
        %v392 = vunpack.c.l.b16 %v305
        %v393 = vunpack.c.h.b16 %v305
        %v394 = vunpack.c.l.b16 %v306
        %v395 = vunpack.c.h.b16 %v306
        %v396 = vunpack.c.l.b16 %v307
        %v397 = vunpack.c.h.b16 %v307
        %v398 = vunpack.c.l.b16 %v308
        %v399 = vunpack.c.h.b16 %v308
        %v400 = vunpack.c.l.b16 %v309
        %v401 = vunpack.c.h.b16 %v309
        %v402 = vunpack.c.l.b16 %v310
        %v403 = vunpack.c.h.b16 %v310
        %v404 = vunpack.c.l.b16 %v311
        %v405 = vunpack.c.h.b16 %v311
        %v406 = vunpack.c.l.b16 %v312
        %v407 = vunpack.c.h.b16 %v312
        %v408 = vunpack.c.l.b16 %v313
        %v409 = vunpack.c.h.b16 %v313
        %v410 = vunpack.c.l.b16 %v314
        %v411 = vunpack.c.h.b16 %v314
        %v412 = vunpack.c.l.b16 %v315
        %v413 = vunpack.c.h.b16 %v315
        %v414 = vunpack.c.l.b16 %v316
        %v415 = vunpack.c.h.b16 %v316
        %v416 = vunpack.c.l.b16 %v317
        %v417 = vunpack.c.h.b16 %v317
        %v418 = vunpack.c.l.b16 %v318
        %v419 = vunpack.c.h.b16 %v318
        %v420 = vunpack.c.l.b16 %v319
        %v421 = vunpack.c.h.b16 %v319
        %v422 = vunpack.c.l.b16 %v320
        %v423 = vunpack.c.h.b16 %v320
        %v424 = vunpack.c.l.b16 %v321
        %v425 = vunpack.c.h.b16 %v321
        %v426 = vunpack.c.l.b16 %v322
        %v427 = vunpack.c.h.b16 %v322
        %v428 = vunpack.c.l.b16 %v323
        %v429 = vunpack.c.h.b16 %v323
        %v430 = vpack.c.b16 %v368, %v366
        %v431 = vpack.c.b16 %v369, %v367
        %v432 = vpack.c.b16 %v372, %v370
        %v433 = vpack.c.b16 %v373, %v371
        %v434 = vpack.c.b16 %v376, %v374
        %v435 = vpack.c.b16 %v377, %v375
        %v436 = vpack.c.b16 %v380, %v378
        %v437 = vpack.c.b16 %v381, %v379
        %v438 = vpack.c.b16 %v384, %v382
        %v439 = vpack.c.b16 %v385, %v383
        %v440 = vpack.c.b16 %v388, %v386
        %v441 = vpack.c.b16 %v389, %v387
        %v442 = vpack.c.b16 %v392, %v390
        %v443 = vpack.c.b16 %v393, %v391
        %v444 = vpack.c.b16 %v396, %v394
        %v445 = vpack.c.b16 %v397, %v395
        %v446 = vpack.c.b16 %v400, %v398
        %v447 = vpack.c.b16 %v401, %v399
        %v448 = vpack.c.b16 %v404, %v402
        %v449 = vpack.c.b16 %v405, %v403
        %v450 = vpack.c.b16 %v408, %v406
        %v451 = vpack.c.b16 %v409, %v407
        %v452 = vpack.c.b16 %v412, %v410
        %v453 = vpack.c.b16 %v413, %v411
        %v454 = vpack.c.b16 %v416, %v414
        %v455 = vpack.c.b16 %v417, %v415
        %v456 = vpack.c.b16 %v420, %v418
        %v457 = vpack.c.b16 %v421, %v419
        %v458 = vpack.c.b16 %v424, %v422
        %v459 = vpack.c.b16 %v425, %v423
        %v460 = vpack.c.b16 %v428, %v426
        %v461 = vpack.c.b16 %v429, %v427
        %494 = vmatprep.subr.bf16.mxu0 %v431
        %495 = vmatpush1.bf16.msra.mxu0 %v430
        %496 = vmatprep.subr.bf16.mxu0 %v433
        %497 = vmatpush1.bf16.msra.mxu0 %v432
        %498 = vmatprep.subr.bf16.mxu0 %v435
        %499 = vmatpush1.bf16.msra.mxu0 %v434
        %500 = vmatprep.subr.bf16.mxu0 %v437
        %501 = vmatpush1.bf16.msra.mxu0 %v436
        %502 = vmatprep.subr.bf16.mxu0 %v439
        %503 = vmatpush1.bf16.msra.mxu0 %v438
        %504 = vmatprep.subr.bf16.mxu0 %v441
        %505 = vmatpush1.bf16.msra.mxu0 %v440
        %506 = vmatprep.subr.bf16.mxu0 %v443
        %507 = vmatpush1.bf16.msra.mxu0 %v442
        %508 = vmatprep.subr.bf16.mxu0 %v445
        %509 = vmatpush1.bf16.msra.mxu0 %v444
        %510 = vmatprep.subr.bf16.mxu0 %v447
        %511 = vmatpush1.bf16.msra.mxu0 %v446
        %512 = vmatprep.subr.bf16.mxu0 %v449
        %513 = vmatpush1.bf16.msra.mxu0 %v448
        %514 = vmatprep.subr.bf16.mxu0 %v451
        %515 = vmatpush1.bf16.msra.mxu0 %v450
        %516 = vmatprep.subr.bf16.mxu0 %v453
        %517 = vmatpush1.bf16.msra.mxu0 %v452
        %518 = vmatprep.subr.bf16.mxu0 %v455
        %519 = vmatpush1.bf16.msra.mxu0 %v454
        %520 = vmatprep.subr.bf16.mxu0 %v457
        %521 = vmatpush1.bf16.msra.mxu0 %v456
        %522 = vmatprep.subr.bf16.mxu0 %v459
        %523 = vmatpush1.bf16.msra.mxu0 %v458
        %524 = vmatprep.subr.bf16.mxu0 %v461
        %525 = vmatpush1.bf16.msra.mxu0 %v460
        %526 = vmatprep.mubr.bf16.mxu0 %v331
        %527 = vmatmul.mubr.bf16.gmra.mrb[0].mxu0 %v330
        %v528 = vpop.f32.mrb[0].mxu0
        %v529 = vadd.f32 0.0, %v528
        %v530 = vpop.f32.mrb[0].mxu0
        %v531 = vadd.f32 0.0, %v530
        %v532 = vpop.f32.mrb[0].mxu0
        %v533 = vadd.f32 0.0, %v532
        %v534 = vpop.f32.mrb[0].mxu0
        %v535 = vadd.f32 0.0, %v534
        %536 = vdwg.mxu0
        %v537 = vadd.f32 %v286, %v529
        %v538 = vadd.f32 %v287, %v531
        %v539 = vadd.f32 %v288, %v533
        %v540 = vadd.f32 %v289, %v535
        %541 = vst [vmem:[#allocation2] sm:$0xff] %v537
        %542 = vst [vmem:[#allocation2 + $0x8] sm:$0xff] %v538
        %543 = vst [vmem:[#allocation2 + $0x10] sm:$0xff] %v539
        %544 = vst [vmem:[#allocation2 + $0x18] sm:$0xff] %v540
        %p545 = scmp.eq.s32.totalorder %s28, 1
        // Predicated region
        $region45: #{tpu_custom_call.1} parent=31 // pred_check
          %p546 = pneg %p545
        $region46: #{tpu_custom_call.1} parent=31 // pred_check_branch
          %548 = sbr.rel (%p546) target = $region48
        $region47: #{tpu_custom_call.1} parent=31 // pred_region
          %v549 = vld [vmem:[#allocation2] sm:$0xff]
          %v550 = vld [vmem:[#allocation2 + $0x8] sm:$0xff]
          %v551 = vld [vmem:[#allocation2 + $0x10] sm:$0xff]
          %v552 = vld [vmem:[#allocation2 + $0x18] sm:$0xff]
          %v553 = vld [vmem:[%s274] sm:$0x3]
          %v555 = vlaneseq
          %v556 = vshrl.u32 %v555, 7
          %v557 = vsub.s32 0, %v556
          %v558 = vrot.slane %v553, %v557
          %v559 = vlaneseq
          %v560 = vshrl.u32 %v559, 7
          %v561 = vsub.s32 1, %v560
          %v562 = vrot.slane %v553, %v561
          %v565 = vadd.f32 %v549, %v558
          %v566 = vadd.f32 %v550, %v562
          %v567 = vadd.f32 %v551, %v558
          %v568 = vadd.f32 %v552, %v562
          %v569 = vmax.f32 %v565, 0.0
          %v570 = vmax.f32 %v566, 0.0
          %v571 = vmax.f32 %v567, 0.0
          %v572 = vmax.f32 %v568, 0.0
          %v573 = vpack.c.bf16 %v571, %v569
          %v574 = vpack.c.bf16 %v572, %v570
          %v577 = vunpack.c.l.b16 %v573
          %v578 = vunpack.c.l.b16 %v574
          %v579 = vunpack.c.h.b16 %v573
          %v580 = vunpack.c.h.b16 %v574
          %v581 = vpack.c.b16 %v578, %v577
          %v582 = vpack.c.b16 %v580, %v579
          %585 = vst [vmem:[#allocation8] sm:$0xff] %v581
          %586 = vst [vmem:[#allocation8 + $0x8] sm:$0xff] %v582
        $region48: #{tpu_custom_call.1} parent=31 // pred_fallthru
          _
        // Predicated region
        $region49: #{tpu_custom_call.1} parent=31 // pred_check
          %p587 = pneg %p142
        $region50: #{tpu_custom_call.1} parent=31 // pred_check_branch
          %589 = sbr.rel (%p587) target = $region52
        $region51: #{tpu_custom_call.1} parent=31 // pred_region
          %s590 = smul.u32 2, %s26
          %s591 = smul.u32 2, %s27
          %s593 = ssub.s32 256, 256
          %594 = vsyncadd [#allocation5], %s593
          %s595 = smul.addr %s590, 2
          %s596 = sadd.s32 %s591, %s595
          %s597 = smul.addr %s596, 64
          %s598 = scalar_lea.hbm %s3, %s597
          %s599 = sshll.u32 [#allocation8], 4
          %s600 = int_to_ptr.vmem [resolvable:$true] %s599
          %605 = dma.vmem_to_hbm [thread:$0]  %s600, 256, %s598, [#allocation5], 128, 128, 8
        $region52: #{tpu_custom_call.1} parent=31 // pred_fallthru
          _
        // Predicated region
        $region53: #{tpu_custom_call.1} parent=31 // pred_check
          %p606 = pneg %p142
        $region54: #{tpu_custom_call.1} parent=31 // pred_check_branch
          %608 = sbr.rel (%p606) target = $region56
        $region55: #{tpu_custom_call.1} parent=31 // pred_region
          %609 = dma.done [#allocation5], 256
        $region56: #{tpu_custom_call.1} parent=31 // pred_fallthru
          _
      $region32: #{tpu_custom_call.1} parent=5 // pred_fallthru
        _
      %p610 = scmp.le.s32.totalorder 2, %s16
      // Predicated region
      $region57: #{tpu_custom_call.1} parent=5 // pred_check
        %p611 = pneg %p610
      $region58: #{tpu_custom_call.1} parent=5 // pred_check_branch
        %613 = sbr.rel (%p611) target = $region60
      $region59: #{tpu_custom_call.1} parent=5 // pred_region
        %s614 = ssub.s32 %s16, 2
      $region60: #{tpu_custom_call.1} parent=5 // pred_fallthru
        _
    $region6: #{tpu_custom_call.1} parent=1 // loop_footer
      %s20 = sadd.s32 1, %s16
    $region7: #{tpu_custom_call.1} parent=1 // loop_footer_branch
      %15 = sbr.rel target = $region3
    $region8: #{tpu_custom_call.1} parent=1 // loop_exit
      _
    %615 = vsyncpa [#allocation4], 1
    %s616 = scalar_lea.sflag [#allocation4], 1
    %617 = vsyncpa %s616, 1
    %618 = vsyncpa [#allocation7], 1
    %s619 = scalar_lea.sflag [#allocation7], 1
    %620 = vsyncpa %s619, 1
    %621 = vsyncpa [#allocation5], 1
    %s622 = scalar_lea.sflag [#allocation5], 1
    %623 = vsyncpa %s622, 1

</llo_original>
